<compile_context>
chip_gen: v7x
topology: tpu7x:2x2x1
jax: 0.10.0
libtpu: 0.0.40
codegen_flags: <defaults>
</compile_context>

<pallas_src>
import jax
import jax.numpy as jnp
from jax.experimental import pallas as pl
from jax.experimental.pallas import tpu as pltpu


def _masked_depth_loss_kernel(pred_ref, target_ref, out_ref):
    # Block shapes: pred_ref/target_ref = (1, C, H, W), out_ref = (1, 8, 128).
    pred = pred_ref[0].astype(jnp.float32)      # (C, H, W)
    target = target_ref[0].astype(jnp.float32)  # (C, H, W)
    mask = (target > 0.0).astype(jnp.float32)   # validity mask, in-kernel

    # ---- scale-invariant depth term (all channels / pixels of the sample) ----
    d = (pred - target) * mask                  # == pred*mask - target*mask
    nvalid = jnp.sum(mask)
    sum_d = jnp.sum(d)
    sum_d2 = jnp.sum(d * d)

    # ---- gradient-matching term (channel 0 only, h == 1 so no 1/h scaling) ----
    p0 = pred[0]        # (H, W)
    t0 = target[0]
    m0 = mask[0]

    # vertical (row) differences
    p_di = p0[1:, :] - p0[:-1, :]
    t_di = t0[1:, :] - t0[:-1, :]
    m_di = m0[1:, :] * m0[:-1, :]               # logical_and on a binary mask
    diff_i = p_di - t_di
    num_i = jnp.sum(m_di * diff_i * diff_i)
    den_i = jnp.sum(m_di)

    # horizontal (column) differences
    p_dj = p0[:, 1:] - p0[:, :-1]
    t_dj = t0[:, 1:] - t0[:, :-1]
    m_dj = m0[:, 1:] * m0[:, :-1]
    diff_j = p_dj - t_dj
    num_j = jnp.sum(m_dj * diff_j * diff_j)
    den_j = jnp.sum(m_dj)

    # Pack the 7 per-sample scalars into sublane 0, lanes 0..6 of the output.
    lane = jax.lax.broadcasted_iota(jnp.int32, (1, 8, 128), 2)
    sub = jax.lax.broadcasted_iota(jnp.int32, (1, 8, 128), 1)
    packed = jnp.zeros((1, 8, 128), jnp.float32)
    for k, v in enumerate((nvalid, sum_d, sum_d2, num_i, den_i, num_j, den_j)):
        packed = jnp.where((sub == 0) & (lane == k), v, packed)
    out_ref[...] = packed


def masked_depth_loss(pred, target):
    assert pred.ndim == target.ndim, "inconsistent dimensions"
    if pred.ndim == 3:                       # (B, H, W) -> (B, 1, H, W), same math
        pred = pred[:, None]
        target = target[:, None]
    assert pred.ndim == 4, "expected NCHW (or NHW) inputs"
    B, C, H, W = pred.shape

    stats = pl.pallas_call(
        _masked_depth_loss_kernel,
        out_shape=jax.ShapeDtypeStruct((B, 8, 128), jnp.float32),
        grid=(B,),
        in_specs=[
            pl.BlockSpec((1, C, H, W), lambda b: (b, 0, 0, 0)),
            pl.BlockSpec((1, C, H, W), lambda b: (b, 0, 0, 0)),
        ],
        out_specs=pl.BlockSpec((1, 8, 128), lambda b: (b, 0, 0)),
        compiler_params=pltpu.CompilerParams(
            dimension_semantics=("parallel",)),
    )(pred, target)

    s = stats[:, 0, :]                       # (B, 128); only lanes 0..6 used
    nvalid = s[:, 0]
    sum_d = s[:, 1]
    sum_d2 = s[:, 2]
    num_i, den_i = s[:, 3], s[:, 4]
    num_j, den_j = s[:, 5], s[:, 6]

    depth_error = (jnp.sum(nvalid * sum_d2) - 0.5 * jnp.sum(sum_d ** 2)) \
        / jnp.sum(nvalid ** 2)
    grad_cost = jnp.sum(num_i) / jnp.sum(den_i) + jnp.sum(num_j) / jnp.sum(den_j)
    return depth_error + grad_cost


def masked_depth_loss_ref(pred, target):
    # Plain-JAX mirror of the PyTorch forward (for correctness checking).
    bsize = target.shape[0]
    mask = (target > 0).astype(jnp.float32)
    t_vec = target.reshape(bsize, -1).astype(jnp.float32)
    m_vec = mask.reshape(bsize, -1)
    p_vec = pred.reshape(bsize, -1).astype(jnp.float32)
    p = p_vec * m_vec
    t = t_vec * m_vec
    d = p - t
    nvalid_pix = jnp.sum(m_vec, axis=1)
    depth_error = (jnp.sum(nvalid_pix * jnp.sum(d ** 2, axis=1))
                   - 0.5 * jnp.sum(jnp.sum(d, axis=1) ** 2)) \
        / jnp.sum(nvalid_pix ** 2)

    pred3 = pred[:, 0] if pred.ndim == 4 else pred
    target3 = target[:, 0] if target.ndim == 4 else target
    mask3 = mask[:, 0] if mask.ndim == 4 else mask
    h = 1
    p_di = (pred3[:, h:, :] - pred3[:, :-h, :]) * (1.0 / h)
    p_dj = (pred3[:, :, h:] - pred3[:, :, :-h]) * (1.0 / h)
    t_di = (target3[:, h:, :] - target3[:, :-h, :]) * (1.0 / h)
    t_dj = (target3[:, :, h:] - target3[:, :, :-h]) * (1.0 / h)
    m_di = mask3[:, h:, :] * mask3[:, :-h, :]
    m_dj = mask3[:, :, h:] * mask3[:, :, :-h]
    grad_cost = jnp.sum(m_di * (p_di - t_di) ** 2) / jnp.sum(m_di) \
        + jnp.sum(m_dj * (p_dj - t_dj) ** 2) / jnp.sum(m_dj)
    return depth_error + grad_cost


if __name__ == "__main__":
    key = jax.random.PRNGKey(0)
    kp, kt, km = jax.random.split(key, 3)

    # Depth-style NCHW inputs: positive depths with ~30% invalid (zero) pixels.
    B, C, H, W = 2, 1, 32, 32
    target = jax.random.uniform(kt, (B, C, H, W), jnp.float32, 0.5, 5.0)
    holes = jax.random.uniform(km, (B, C, H, W)) < 0.3
    target = jnp.where(holes, 0.0, target)
    pred = target + 0.1 * jax.random.normal(kp, (B, C, H, W), dtype=jnp.float32)

    out = jax.block_until_ready(masked_depth_loss(pred, target))
    ref = masked_depth_loss_ref(pred, target)
    assert jnp.allclose(out, ref, rtol=1e-5, atol=1e-5), (out, ref)

    print("KERNEL_OK")
</pallas_src>

<mosaic_0001>
module attributes {stable_mosaic.version = 11 : i64} {
  func.func @_masked_depth_loss_kernel(%arg0: i32, %arg1: memref<1x1x32x32xf32, #tpu.memory_space<vmem>>, %arg2: memref<1x1x32x32xf32, #tpu.memory_space<vmem>>, %arg3: memref<1x8x128xf32, #tpu.memory_space<vmem>>) attributes {dimension_semantics = [#tpu.dimension_semantics<parallel>], iteration_bounds = array<i64: 2>, scalar_prefetch = 0 : i64, scratch_operands = 0 : i64, tpu.core_type = #tpu.core_type<tc>, window_params = [{transform_indices = @transform_0, window_bounds = array<i64: 1, 1, 32, 32>}, {transform_indices = @transform_1, window_bounds = array<i64: 1, 1, 32, 32>}, {transform_indices = @transform_2, window_bounds = array<i64: 1, 8, 128>}]} {
    %c0 = arith.constant 0 : index
    %c0_0 = arith.constant 0 : index
    %c0_1 = arith.constant 0 : index
    %c0_2 = arith.constant 0 : index
    %0 = vector.load %arg1[%c0, %c0_0, %c0_1, %c0_2] : memref<1x1x32x32xf32, #tpu.memory_space<vmem>>, vector<1x1x32x32xf32>
    %1 = vector.shape_cast %0 : vector<1x1x32x32xf32> to vector<1x32x32xf32>
    %c0_3 = arith.constant 0 : index
    %c0_4 = arith.constant 0 : index
    %c0_5 = arith.constant 0 : index
    %c0_6 = arith.constant 0 : index
    %2 = vector.load %arg2[%c0_3, %c0_4, %c0_5, %c0_6] : memref<1x1x32x32xf32, #tpu.memory_space<vmem>>, vector<1x1x32x32xf32>
    %3 = vector.shape_cast %2 : vector<1x1x32x32xf32> to vector<1x32x32xf32>
    %cst = arith.constant 0.000000e+00 : f32
    %4 = vector.broadcast %cst : f32 to vector<1x32x32xf32>
    %5 = arith.cmpf ogt, %3, %4 : vector<1x32x32xf32>
    %6 = arith.extui %5 : vector<1x32x32xi1> to vector<1x32x32xi32>
    %7 = arith.sitofp %6 : vector<1x32x32xi32> to vector<1x32x32xf32>
    %8 = arith.subf %1, %3 : vector<1x32x32xf32>
    %9 = arith.mulf %8, %7 : vector<1x32x32xf32>
    %10 = vector.shape_cast %7 : vector<1x32x32xf32> to vector<1x1x32x32xf32>
    %cst_7 = arith.constant dense<0.000000e+00> : vector<1xf32>
    %11 = vector.multi_reduction <add>, %10, %cst_7 [1, 2, 3] : vector<1x1x32x32xf32> to vector<1xf32>
    %12 = vector.shape_cast %11 : vector<1xf32> to vector<1x1x1x1xf32>
    %13 = vector.extract %12[0, 0, 0, 0] : f32 from vector<1x1x1x1xf32>
    %14 = vector.shape_cast %9 : vector<1x32x32xf32> to vector<1x1x32x32xf32>
    %cst_8 = arith.constant dense<0.000000e+00> : vector<1xf32>
    %15 = vector.multi_reduction <add>, %14, %cst_8 [1, 2, 3] : vector<1x1x32x32xf32> to vector<1xf32>
    %16 = vector.shape_cast %15 : vector<1xf32> to vector<1x1x1x1xf32>
    %17 = vector.extract %16[0, 0, 0, 0] : f32 from vector<1x1x1x1xf32>
    %18 = arith.mulf %9, %9 : vector<1x32x32xf32>
    %19 = vector.shape_cast %18 : vector<1x32x32xf32> to vector<1x1x32x32xf32>
    %cst_9 = arith.constant dense<0.000000e+00> : vector<1xf32>
    %20 = vector.multi_reduction <add>, %19, %cst_9 [1, 2, 3] : vector<1x1x32x32xf32> to vector<1xf32>
    %21 = vector.shape_cast %20 : vector<1xf32> to vector<1x1x1x1xf32>
    %22 = vector.extract %21[0, 0, 0, 0] : f32 from vector<1x1x1x1xf32>
    %23 = vector.shape_cast %1 : vector<1x32x32xf32> to vector<32x32xf32>
    %24 = vector.shape_cast %3 : vector<1x32x32xf32> to vector<32x32xf32>
    %25 = vector.shape_cast %7 : vector<1x32x32xf32> to vector<32x32xf32>
    %26 = vector.extract_strided_slice %23 {offsets = [1, 0], sizes = [31, 32], strides = [1, 1]} : vector<32x32xf32> to vector<31x32xf32>
    %27 = vector.extract_strided_slice %23 {offsets = [0, 0], sizes = [31, 32], strides = [1, 1]} : vector<32x32xf32> to vector<31x32xf32>
    %28 = arith.subf %26, %27 : vector<31x32xf32>
    %29 = vector.extract_strided_slice %24 {offsets = [1, 0], sizes = [31, 32], strides = [1, 1]} : vector<32x32xf32> to vector<31x32xf32>
    %30 = vector.extract_strided_slice %24 {offsets = [0, 0], sizes = [31, 32], strides = [1, 1]} : vector<32x32xf32> to vector<31x32xf32>
    %31 = arith.subf %29, %30 : vector<31x32xf32>
    %32 = vector.extract_strided_slice %25 {offsets = [1, 0], sizes = [31, 32], strides = [1, 1]} : vector<32x32xf32> to vector<31x32xf32>
    %33 = vector.extract_strided_slice %25 {offsets = [0, 0], sizes = [31, 32], strides = [1, 1]} : vector<32x32xf32> to vector<31x32xf32>
    %34 = arith.mulf %32, %33 : vector<31x32xf32>
    %35 = arith.subf %28, %31 : vector<31x32xf32>
    %36 = arith.mulf %34, %35 : vector<31x32xf32>
    %37 = arith.mulf %36, %35 : vector<31x32xf32>
    %38 = vector.shape_cast %37 : vector<31x32xf32> to vector<1x31x32xf32>
    %cst_10 = arith.constant dense<0.000000e+00> : vector<1xf32>
    %39 = vector.multi_reduction <add>, %38, %cst_10 [1, 2] : vector<1x31x32xf32> to vector<1xf32>
    %40 = vector.shape_cast %39 : vector<1xf32> to vector<1x1x1xf32>
    %41 = vector.extract %40[0, 0, 0] : f32 from vector<1x1x1xf32>
    %42 = vector.shape_cast %34 : vector<31x32xf32> to vector<1x31x32xf32>
    %cst_11 = arith.constant dense<0.000000e+00> : vector<1xf32>
    %43 = vector.multi_reduction <add>, %42, %cst_11 [1, 2] : vector<1x31x32xf32> to vector<1xf32>
    %44 = vector.shape_cast %43 : vector<1xf32> to vector<1x1x1xf32>
    %45 = vector.extract %44[0, 0, 0] : f32 from vector<1x1x1xf32>
    %46 = vector.extract_strided_slice %23 {offsets = [0, 1], sizes = [32, 31], strides = [1, 1]} : vector<32x32xf32> to vector<32x31xf32>
    %47 = vector.extract_strided_slice %23 {offsets = [0, 0], sizes = [32, 31], strides = [1, 1]} : vector<32x32xf32> to vector<32x31xf32>
    %48 = arith.subf %46, %47 : vector<32x31xf32>
    %49 = vector.extract_strided_slice %24 {offsets = [0, 1], sizes = [32, 31], strides = [1, 1]} : vector<32x32xf32> to vector<32x31xf32>
    %50 = vector.extract_strided_slice %24 {offsets = [0, 0], sizes = [32, 31], strides = [1, 1]} : vector<32x32xf32> to vector<32x31xf32>
    %51 = arith.subf %49, %50 : vector<32x31xf32>
    %52 = vector.extract_strided_slice %25 {offsets = [0, 1], sizes = [32, 31], strides = [1, 1]} : vector<32x32xf32> to vector<32x31xf32>
    %53 = vector.extract_strided_slice %25 {offsets = [0, 0], sizes = [32, 31], strides = [1, 1]} : vector<32x32xf32> to vector<32x31xf32>
    %54 = arith.mulf %52, %53 : vector<32x31xf32>
    %55 = arith.subf %48, %51 : vector<32x31xf32>
    %56 = arith.mulf %54, %55 : vector<32x31xf32>
    %57 = arith.mulf %56, %55 : vector<32x31xf32>
    %58 = vector.shape_cast %57 : vector<32x31xf32> to vector<1x32x31xf32>
    %cst_12 = arith.constant dense<0.000000e+00> : vector<1xf32>
    %59 = vector.multi_reduction <add>, %58, %cst_12 [1, 2] : vector<1x32x31xf32> to vector<1xf32>
    %60 = vector.shape_cast %59 : vector<1xf32> to vector<1x1x1xf32>
    %61 = vector.extract %60[0, 0, 0] : f32 from vector<1x1x1xf32>
    %62 = vector.shape_cast %54 : vector<32x31xf32> to vector<1x32x31xf32>
    %cst_13 = arith.constant dense<0.000000e+00> : vector<1xf32>
    %63 = vector.multi_reduction <add>, %62, %cst_13 [1, 2] : vector<1x32x31xf32> to vector<1xf32>
    %64 = vector.shape_cast %63 : vector<1xf32> to vector<1x1x1xf32>
    %65 = vector.extract %64[0, 0, 0] : f32 from vector<1x1x1xf32>
    %66 = tpu.iota {dimensions = array<i32: 2>} : vector<1x8x128xi32>
    %67 = tpu.iota {dimensions = array<i32: 1>} : vector<1x8x128xi32>
    %cst_14 = arith.constant 0.000000e+00 : f32
    %68 = vector.broadcast %cst_14 : f32 to vector<1x8x128xf32>
    %c0_i32 = arith.constant 0 : i32
    %69 = vector.broadcast %c0_i32 : i32 to vector<1x8x128xi32>
    %70 = arith.cmpi eq, %67, %69 : vector<1x8x128xi32>
    %c0_i32_15 = arith.constant 0 : i32
    %71 = vector.broadcast %c0_i32_15 : i32 to vector<1x8x128xi32>
    %72 = arith.cmpi eq, %66, %71 : vector<1x8x128xi32>
    %73 = arith.andi %70, %72 : vector<1x8x128xi1>
    %74 = vector.broadcast %13 : f32 to vector<1x8x128xf32>
    %75 = arith.select %73, %74, %68 : vector<1x8x128xi1>, vector<1x8x128xf32>
    %c0_i32_16 = arith.constant 0 : i32
    %76 = vector.broadcast %c0_i32_16 : i32 to vector<1x8x128xi32>
    %77 = arith.cmpi eq, %67, %76 : vector<1x8x128xi32>
    %c1_i32 = arith.constant 1 : i32
    %78 = vector.broadcast %c1_i32 : i32 to vector<1x8x128xi32>
    %79 = arith.cmpi eq, %66, %78 : vector<1x8x128xi32>
    %80 = arith.andi %77, %79 : vector<1x8x128xi1>
    %81 = vector.broadcast %17 : f32 to vector<1x8x128xf32>
    %82 = arith.select %80, %81, %75 : vector<1x8x128xi1>, vector<1x8x128xf32>
    %c0_i32_17 = arith.constant 0 : i32
    %83 = vector.broadcast %c0_i32_17 : i32 to vector<1x8x128xi32>
    %84 = arith.cmpi eq, %67, %83 : vector<1x8x128xi32>
    %c2_i32 = arith.constant 2 : i32
    %85 = vector.broadcast %c2_i32 : i32 to vector<1x8x128xi32>
    %86 = arith.cmpi eq, %66, %85 : vector<1x8x128xi32>
    %87 = arith.andi %84, %86 : vector<1x8x128xi1>
    %88 = vector.broadcast %22 : f32 to vector<1x8x128xf32>
    %89 = arith.select %87, %88, %82 : vector<1x8x128xi1>, vector<1x8x128xf32>
    %c0_i32_18 = arith.constant 0 : i32
    %90 = vector.broadcast %c0_i32_18 : i32 to vector<1x8x128xi32>
    %91 = arith.cmpi eq, %67, %90 : vector<1x8x128xi32>
    %c3_i32 = arith.constant 3 : i32
    %92 = vector.broadcast %c3_i32 : i32 to vector<1x8x128xi32>
    %93 = arith.cmpi eq, %66, %92 : vector<1x8x128xi32>
    %94 = arith.andi %91, %93 : vector<1x8x128xi1>
    %95 = vector.broadcast %41 : f32 to vector<1x8x128xf32>
    %96 = arith.select %94, %95, %89 : vector<1x8x128xi1>, vector<1x8x128xf32>
    %c0_i32_19 = arith.constant 0 : i32
    %97 = vector.broadcast %c0_i32_19 : i32 to vector<1x8x128xi32>
    %98 = arith.cmpi eq, %67, %97 : vector<1x8x128xi32>
    %c4_i32 = arith.constant 4 : i32
    %99 = vector.broadcast %c4_i32 : i32 to vector<1x8x128xi32>
    %100 = arith.cmpi eq, %66, %99 : vector<1x8x128xi32>
    %101 = arith.andi %98, %100 : vector<1x8x128xi1>
    %102 = vector.broadcast %45 : f32 to vector<1x8x128xf32>
    %103 = arith.select %101, %102, %96 : vector<1x8x128xi1>, vector<1x8x128xf32>
    %c0_i32_20 = arith.constant 0 : i32
    %104 = vector.broadcast %c0_i32_20 : i32 to vector<1x8x128xi32>
    %105 = arith.cmpi eq, %67, %104 : vector<1x8x128xi32>
    %c5_i32 = arith.constant 5 : i32
    %106 = vector.broadcast %c5_i32 : i32 to vector<1x8x128xi32>
    %107 = arith.cmpi eq, %66, %106 : vector<1x8x128xi32>
    %108 = arith.andi %105, %107 : vector<1x8x128xi1>
    %109 = vector.broadcast %61 : f32 to vector<1x8x128xf32>
    %110 = arith.select %108, %109, %103 : vector<1x8x128xi1>, vector<1x8x128xf32>
    %c0_i32_21 = arith.constant 0 : i32
    %111 = vector.broadcast %c0_i32_21 : i32 to vector<1x8x128xi32>
    %112 = arith.cmpi eq, %67, %111 : vector<1x8x128xi32>
    %c6_i32 = arith.constant 6 : i32
    %113 = vector.broadcast %c6_i32 : i32 to vector<1x8x128xi32>
    %114 = arith.cmpi eq, %66, %113 : vector<1x8x128xi32>
    %115 = arith.andi %112, %114 : vector<1x8x128xi1>
    %116 = vector.broadcast %65 : f32 to vector<1x8x128xf32>
    %117 = arith.select %115, %116, %110 : vector<1x8x128xi1>, vector<1x8x128xf32>
    %c0_22 = arith.constant 0 : index
    %c0_23 = arith.constant 0 : index
    %c0_24 = arith.constant 0 : index
    %118 = vector.load %arg3[%c0_22, %c0_23, %c0_24] : memref<1x8x128xf32, #tpu.memory_space<vmem>>, vector<1x8x128xf32>
    tpu.vector_store %arg3[%c0_22, %c0_23, %c0_24], %117 {strides = array<i32>} : memref<1x8x128xf32, #tpu.memory_space<vmem>>, vector<1x8x128xf32>,
    return
  }
  func.func @transform_0(%arg0: i32) -> (i32, i32, i32, i32) {
    %c0_i32 = arith.constant 0 : i32
    %c0_i32_0 = arith.constant 0 : i32
    %c0_i32_1 = arith.constant 0 : i32
    %c0_i32_2 = arith.constant 0 : i32
    return %arg0, %c0_i32, %c0_i32_0, %c0_i32_1 : i32, i32, i32, i32
  }
  func.func @transform_1(%arg0: i32) -> (i32, i32, i32, i32) {
    %c0_i32 = arith.constant 0 : i32
    %c0_i32_0 = arith.constant 0 : i32
    %c0_i32_1 = arith.constant 0 : i32
    %c0_i32_2 = arith.constant 0 : i32
    return %arg0, %c0_i32, %c0_i32_0, %c0_i32_1 : i32, i32, i32, i32
  }
  func.func @transform_2(%arg0: i32) -> (i32, i32, i32) {
    %c0_i32 = arith.constant 0 : i32
    %c0_i32_0 = arith.constant 0 : i32
    %c0_i32_1 = arith.constant 0 : i32
    return %arg0, %c0_i32, %c0_i32_0 : i32, i32, i32
  }
}

</mosaic_0001>

<llo_original>
// kernel: tpu_custom_call.1
$region0: #{tpu_custom_call.1}
  #allocation0 [shape = 'u32[]', space=smem, size = 0x4, offset = 0x4, fixed_abs, tag = 'smem constant byte address 0x4 - core index']
  #allocation1 [shape = 'u32[144,128]{1,0:T(1,128)}', space=vmem, size = 0x12000, scoped, tag = 'internal scratch']
  %s0 = inlined_call_operand.hbm [shape: f32[2,1,32,32], index: 0, kind: input, shape index: {}]
  %s1 = inlined_call_operand.hbm [shape: f32[2,1,32,32], index: 1, kind: input, shape index: {}]
  %s2 = inlined_call_operand.hbm [shape: f32[2,8,128], index: 2, kind: output, shape index: {}]
  %s3 = sld [smem:[#allocation0]]
  $region49: #{tpu_custom_call.1} parent=0
    _
  %s5 = ssub.s32 1, %s3
  %s6 = scalar_select 0, %s5, %s3
  $region1: #{tpu_custom_call.1} parent=0
    #allocation2 [shape = 'u8[32768]{0}', space=vmem, size = 0x8000, scoped, tag = 'input window, operand 0']
    #allocation3 [shape = 's32[2]{0}', space=sflag, size = 0x8, scoped, tag = 'scoped memory for tpu_custom_call.1']
    #allocation4 [shape = 's32[2]{0}', space=sflag, size = 0x8, scoped, tag = 'scoped memory for tpu_custom_call.1']
    #allocation5 [shape = 'u8[32768]{0}', space=vmem, size = 0x8000, scoped, tag = 'input window, operand 1']
    #allocation6 [shape = 's32[2]{0}', space=sflag, size = 0x8, scoped, tag = 'scoped memory for tpu_custom_call.1']
    #allocation7 [shape = 'u8[8192]{0}', space=vmem, size = 0x2000, scoped, tag = 'output window, operand 0']
    %7 = vsyncpa [#allocation3], 0
    %s8 = scalar_lea.sflag [#allocation3], 1
    %9 = vsyncpa %s8, 0
    %10 = vsyncpa [#allocation6], 0
    %s11 = scalar_lea.sflag [#allocation6], 1
    %12 = vsyncpa %s11, 0
    %13 = vsyncpa [#allocation4], 0
    %s14 = scalar_lea.sflag [#allocation4], 1
    %15 = vsyncpa %s14, 0
    loop: start=0, step=1, limit=4
    $region2: #{tpu_custom_call.1} parent=1 // loop_pre_header
      _
    $region3: #{tpu_custom_call.1} parent=1 // loop_header
      %s17 = sphi 0, %s21
      %p18 = scmp.ge.s32.totalorder %s17, 4
      %s27 = sphi 0, %s29
      %s30 = sphi 0, %s27
      %s31 = sphi 0, %s30
      %s47 = sphi 0, %s31
      %s53 = sphi 0, %s55
      %s56 = sphi 0, %s53
      %s57 = sphi 0, %s56
      %s73 = sphi 0, %s57
      %s79 = sphi 0, %s81
      %s82 = sphi 0, %s79
      %s83 = sphi 0, %s82
      %s99 = sphi 0, %s83
    $region4: #{tpu_custom_call.1} parent=1 // loop_header_branch
      %20 = sbr.rel (%p18) target = $region8
    $region5: #{tpu_custom_call.1} parent=1 // loop_body
      %s22 = ssub.s32 %s17, 1
      %s23 = ssub.s32 %s17, 2
      %s24 = sadd.s32 %s17, 1
      %s25 = ssub.s32 %s17, %s24
      %p26 = scmp.eq.s32.totalorder %s25, 0
      %s28 = sadd.s32 %s27, 1
      %s29 = scalar_select %p26, %s27, %s28
      %p32 = pneg %p26
      %p33 = scmp.eq.s32.totalorder %s17, 1
      %p34 = por %p32, %p33
      %p35 = scmp.ne.s32.totalorder %s27, %s30
      %p36 = scmp.eq.s32.totalorder %s17, 0
      %p37 = por %p35, %p36
      %p38 = scmp.ne.s32.totalorder %s27, %s30
      %p39 = scmp.eq.s32.totalorder %s22, 1
      %p40 = por %p38, %p39
      %p41 = scmp.ne.s32.totalorder %s30, %s31
      %p42 = scmp.eq.s32.totalorder %s22, 0
      %p43 = por %p41, %p42
      %p44 = scmp.ne.s32.totalorder %s30, %s31
      %p45 = scmp.eq.s32.totalorder %s23, 1
      %p46 = por %p44, %p45
      %p48 = scmp.ne.s32.totalorder %s31, %s47
      %p49 = scmp.eq.s32.totalorder %s23, 0
      %p50 = por %p48, %p49
      %s51 = ssub.s32 %s17, %s24
      %p52 = scmp.eq.s32.totalorder %s51, 0
      %s54 = sadd.s32 %s53, 1
      %s55 = scalar_select %p52, %s53, %s54
      %p58 = pneg %p52
      %p59 = scmp.eq.s32.totalorder %s17, 1
      %p60 = por %p58, %p59
      %p61 = scmp.ne.s32.totalorder %s53, %s56
      %p62 = scmp.eq.s32.totalorder %s17, 0
      %p63 = por %p61, %p62
      %p64 = scmp.ne.s32.totalorder %s53, %s56
      %p65 = scmp.eq.s32.totalorder %s22, 1
      %p66 = por %p64, %p65
      %p67 = scmp.ne.s32.totalorder %s56, %s57
      %p68 = scmp.eq.s32.totalorder %s22, 0
      %p69 = por %p67, %p68
      %p70 = scmp.ne.s32.totalorder %s56, %s57
      %p71 = scmp.eq.s32.totalorder %s23, 1
      %p72 = por %p70, %p71
      %p74 = scmp.ne.s32.totalorder %s57, %s73
      %p75 = scmp.eq.s32.totalorder %s23, 0
      %p76 = por %p74, %p75
      %s77 = ssub.s32 %s17, %s24
      %p78 = scmp.eq.s32.totalorder %s77, 0
      %s80 = sadd.s32 %s79, 1
      %s81 = scalar_select %p78, %s79, %s80
      %p84 = pneg %p78
      %p85 = scmp.eq.s32.totalorder %s17, 1
      %p86 = por %p84, %p85
      %p87 = scmp.ne.s32.totalorder %s79, %s82
      %p88 = scmp.eq.s32.totalorder %s17, 0
      %p89 = por %p87, %p88
      %p90 = scmp.ne.s32.totalorder %s79, %s82
      %p91 = scmp.eq.s32.totalorder %s22, 1
      %p92 = por %p90, %p91
      %p93 = scmp.ne.s32.totalorder %s82, %s83
      %p94 = scmp.eq.s32.totalorder %s22, 0
      %p95 = por %p93, %p94
      %p96 = scmp.ne.s32.totalorder %s82, %s83
      %p97 = scmp.eq.s32.totalorder %s23, 1
      %p98 = por %p96, %p97
      %p100 = scmp.ne.s32.totalorder %s83, %s99
      %p101 = scmp.eq.s32.totalorder %s23, 0
      %p102 = por %p100, %p101
      %p103 = scmp.le.s32.totalorder 1, %s17
      %p104 = scmp.lt.s32.totalorder %s17, 3
      %p105 = pnand %p103, %p104
      %p106 = pneg %p105
      // Predicated region
      $region9: #{tpu_custom_call.1} parent=5 // pred_check
        _
      $region10: #{tpu_custom_call.1} parent=5 // pred_check_branch
        %108 = sbr.rel (%p105) target = $region12
      $region11: #{tpu_custom_call.1} parent=5 // pred_region
        %s109 = ssub.s32 %s17, 1
      $region12: #{tpu_custom_call.1} parent=5 // pred_fallthru
        _
      %p110 = scmp.lt.s32.totalorder %s17, 2
      // Predicated region
      $region13: #{tpu_custom_call.1} parent=5 // pred_check
        %p111 = pneg %p110
      $region14: #{tpu_custom_call.1} parent=5 // pred_check_branch
        %113 = sbr.rel (%p111) target = $region16
      $region15: #{tpu_custom_call.1} parent=5 // pred_region
        // Predicated region
        $region17: #{tpu_custom_call.1} parent=15 // pred_check
          %p114 = pneg %p37
        $region18: #{tpu_custom_call.1} parent=15 // pred_check_branch
          %116 = sbr.rel (%p114) target = $region20
        $region19: #{tpu_custom_call.1} parent=15 // pred_region
          %s117 = sand.u32 %s27, 1
          %s118 = scalar_lea.sflag [#allocation3], %s117
          %s119 = sand.u32 %s27, 1
          %s120 = smul.addr %s119, 32
          %s121 = scalar_lea.vmem [#allocation2], %s120
          %s123 = ssub.s32 512, 512
          %124 = vsyncadd %s118, %s123
          %s125 = smul.addr %s17, 4
          %s126 = smul.addr %s125, 128
          %s127 = scalar_lea.hbm %s0, %s126
          %s128 = sshll.u32 %s121, 4
          %s129 = int_to_ptr.vmem [resolvable:$true] %s128
          %134 = dma.hbm_to_vmem [thread:$0]  %s127, 512, %s129, %s118, 128, 128, 8
        $region20: #{tpu_custom_call.1} parent=15 // pred_fallthru
          _
        // Predicated region
        $region21: #{tpu_custom_call.1} parent=15 // pred_check
          %p135 = pneg %p63
        $region22: #{tpu_custom_call.1} parent=15 // pred_check_branch
          %137 = sbr.rel (%p135) target = $region24
        $region23: #{tpu_custom_call.1} parent=15 // pred_region
          %s138 = sand.u32 %s53, 1
          %s139 = scalar_lea.sflag [#allocation6], %s138
          %s140 = sand.u32 %s53, 1
          %s141 = smul.addr %s140, 32
          %s142 = scalar_lea.vmem [#allocation5], %s141
          %s144 = ssub.s32 512, 512
          %145 = vsyncadd %s139, %s144
          %s146 = smul.addr %s17, 4
          %s147 = smul.addr %s146, 128
          %s148 = scalar_lea.hbm %s1, %s147
          %s149 = sshll.u32 %s142, 4
          %s150 = int_to_ptr.vmem [resolvable:$true] %s149
          %155 = dma.hbm_to_vmem [thread:$0]  %s148, 512, %s150, %s139, 128, 128, 8
        $region24: #{tpu_custom_call.1} parent=15 // pred_fallthru
          _
      $region16: #{tpu_custom_call.1} parent=5 // pred_fallthru
        _
      %p156 = scmp.le.s32.totalorder 1, %s17
      %p157 = scmp.lt.s32.totalorder %s17, 3
      %p158 = pnand %p156, %p157
      %p159 = pneg %p158
      // Predicated region
      $region25: #{tpu_custom_call.1} parent=5 // pred_check
        _
      $region26: #{tpu_custom_call.1} parent=5 // pred_check_branch
        %161 = sbr.rel (%p158) target = $region28
      $region27: #{tpu_custom_call.1} parent=5 // pred_region
        %s162 = ssub.s32 %s17, 1
        %s163 = sand.u32 %s30, 1
        %s164 = scalar_lea.sflag [#allocation3], %s163
        %s165 = sand.u32 %s30, 1
        %s166 = smul.addr %s165, 32
        %s167 = scalar_lea.vmem [#allocation2], %s166
        // Predicated region
        $region29: #{tpu_custom_call.1} parent=27 // pred_check
          %p168 = pneg %p43
        $region30: #{tpu_custom_call.1} parent=27 // pred_check_branch
          %170 = sbr.rel (%p168) target = $region32
        $region31: #{tpu_custom_call.1} parent=27 // pred_region
          %171 = dma.done %s164, 512
        $region32: #{tpu_custom_call.1} parent=27 // pred_fallthru
          _
        %s172 = sand.u32 %s56, 1
        %s173 = scalar_lea.sflag [#allocation6], %s172
        %s174 = sand.u32 %s56, 1
        %s175 = smul.addr %s174, 32
        %s176 = scalar_lea.vmem [#allocation5], %s175
        // Predicated region
        $region33: #{tpu_custom_call.1} parent=27 // pred_check
          %p177 = pneg %p69
        $region34: #{tpu_custom_call.1} parent=27 // pred_check_branch
          %179 = sbr.rel (%p177) target = $region36
        $region35: #{tpu_custom_call.1} parent=27 // pred_region
          %180 = dma.done %s173, 512
        $region36: #{tpu_custom_call.1} parent=27 // pred_fallthru
          _
        %s181 = sand.u32 %s30, 1
        %s182 = scalar_lea.sflag [#allocation3], %s181
        %s183 = sand.u32 %s30, 1
        %s184 = smul.addr %s183, 32
        %s185 = scalar_lea.vmem [#allocation2], %s184
        %p186 = pneg %p43
        %p187 = pneg %p40
        %s188 = sand.u32 %s56, 1
        %s189 = scalar_lea.sflag [#allocation6], %s188
        %s190 = sand.u32 %s56, 1
        %s191 = smul.addr %s190, 32
        %s192 = scalar_lea.vmem [#allocation5], %s191
        %p193 = pneg %p69
        %p194 = pneg %p66
        %p195 = pneg %p95
        %p196 = pneg %p92
        %s197 = sand.u32 %s82, 1
        %s198 = scalar_lea.sflag [#allocation4], %s197
        %s199 = sand.u32 %s82, 1
        %s200 = smul.addr %s199, 8
        %s201 = scalar_lea.vmem [#allocation7], %s200
        %v202 = vld [vmem:[%s167] sm:$0xff]
        %v203 = vld [vmem:[%s167 + $0x8] sm:$0xff]
        %v204 = vld [vmem:[%s167 + $0x10] sm:$0xff]
        %v205 = vld [vmem:[%s167 + $0x18] sm:$0xff]
        %v206 = vld [vmem:[%s176] sm:$0xff]
        %v207 = vld [vmem:[%s176 + $0x8] sm:$0xff]
        %v208 = vld [vmem:[%s176 + $0x10] sm:$0xff]
        %v209 = vld [vmem:[%s176 + $0x18] sm:$0xff]
        %vm210 = vcmp.gt.f32.partialorder %v206, 0.0
        %vm211 = vcmp.gt.f32.partialorder %v207, 0.0
        %vm212 = vcmp.gt.f32.partialorder %v208, 0.0
        %vm213 = vcmp.gt.f32.partialorder %v209, 0.0
        %v214 = vsel %vm210, 1, 0
        %v215 = vsel %vm211, 1, 0
        %v216 = vsel %vm212, 1, 0
        %v217 = vsel %vm213, 1, 0
        %v218 = vcvt.s32.f32 %v214
        %v219 = vcvt.s32.f32 %v215
        %v220 = vcvt.s32.f32 %v216
        %v221 = vcvt.s32.f32 %v217
        %v222 = vsub.f32 %v202, %v206
        %v223 = vsub.f32 %v203, %v207
        %v224 = vsub.f32 %v204, %v208
        %v225 = vsub.f32 %v205, %v209
        %v226 = vmul.f32 %v222, %v218
        %v227 = vmul.f32 %v223, %v219
        %v228 = vmul.f32 %v224, %v220
        %v229 = vmul.f32 %v225, %v221
        %vm230 = vcmask 261120
        %v231 = vsel %vm230, %v218, 0.0
        %v232 = vsel %vm230, %v219, 0.0
        %v233 = vadd.f32 %v231, %v232
        %v234 = vsel %vm230, %v220, 0.0
        %v235 = vadd.f32 %v233, %v234
        %v236 = vsel %vm230, %v221, 0.0
        %v237 = vadd.f32 %v235, %v236
        %238 = vadd.xlane.f32.xlu0 %v237
        %v239 = vpop.xlane.xlu0 %238
        %v240 = vrot.slane %v239, 4
        %v241 = vadd.f32 %v239, %v240
        %v242 = vrot.slane %v241, 2
        %v243 = vadd.f32 %v241, %v242
        %v244 = vrot.slane %v243, 1
        %v245 = vadd.f32 %v243, %v244
        %s246 = vtos %v245
        %v247 = vsel %vm230, %v226, 0.0
        %v248 = vsel %vm230, %v227, 0.0
        %v249 = vadd.f32 %v247, %v248
        %v250 = vsel %vm230, %v228, 0.0
        %v251 = vadd.f32 %v249, %v250
        %v252 = vsel %vm230, %v229, 0.0
        %v253 = vadd.f32 %v251, %v252
        %254 = vadd.xlane.f32.xlu0 %v253
        %v255 = vpop.xlane.xlu0 %254
        %v256 = vrot.slane %v255, 4
        %v257 = vadd.f32 %v255, %v256
        %v258 = vrot.slane %v257, 2
        %v259 = vadd.f32 %v257, %v258
        %v260 = vrot.slane %v259, 1
        %v261 = vadd.f32 %v259, %v260
        %s262 = vtos %v261
        %v263 = vmul.f32 %v226, %v226
        %v264 = vmul.f32 %v227, %v227
        %v265 = vmul.f32 %v228, %v228
        %v266 = vmul.f32 %v229, %v229
        %v267 = vsel %vm230, %v263, 0.0
        %v268 = vsel %vm230, %v264, 0.0
        %v269 = vadd.f32 %v267, %v268
        %v270 = vsel %vm230, %v265, 0.0
        %v271 = vadd.f32 %v269, %v270
        %v272 = vsel %vm230, %v266, 0.0
        %v273 = vadd.f32 %v271, %v272
        %274 = vadd.xlane.f32.xlu0 %v273
        %v275 = vpop.xlane.xlu0 %274
        %v276 = vrot.slane %v275, 4
        %v277 = vadd.f32 %v275, %v276
        %v278 = vrot.slane %v277, 2
        %v279 = vadd.f32 %v277, %v278
        %v280 = vrot.slane %v279, 1
        %v281 = vadd.f32 %v279, %v280
        %s282 = vtos %v281
        %vm287 = vcmask 1040384
        %v288 = vrot.slane %v202, 7
        %v289 = vrot.slane %v203, 7
        %v290 = vsel %vm287, %v288, %v289
        %v291 = vrot.slane %v204, 7
        %v292 = vsel %vm287, %v289, %v291
        %v293 = vrot.slane %v205, 7
        %v294 = vsel %vm287, %v291, %v293
        %v299 = vsub.f32 %v202, %v288
        %v300 = vsub.f32 %v203, %v290
        %v301 = vsub.f32 %v204, %v292
        %v302 = vsub.f32 %v205, %v294
        %v307 = vrot.slane %v206, 7
        %v308 = vrot.slane %v207, 7
        %v309 = vsel %vm287, %v307, %v308
        %v310 = vrot.slane %v208, 7
        %v311 = vsel %vm287, %v308, %v310
        %v312 = vrot.slane %v209, 7
        %v313 = vsel %vm287, %v310, %v312
        %v318 = vsub.f32 %v206, %v307
        %v319 = vsub.f32 %v207, %v309
        %v320 = vsub.f32 %v208, %v311
        %v321 = vsub.f32 %v209, %v313
        %v326 = vrot.slane %v218, 7
        %v327 = vrot.slane %v219, 7
        %v328 = vsel %vm287, %v326, %v327
        %v329 = vrot.slane %v220, 7
        %v330 = vsel %vm287, %v327, %v329
        %v331 = vrot.slane %v221, 7
        %v332 = vsel %vm287, %v329, %v331
        %v337 = vmul.f32 %v218, %v326
        %v338 = vmul.f32 %v219, %v328
        %v339 = vmul.f32 %v220, %v330
        %v340 = vmul.f32 %v221, %v332
        %v341 = vsub.f32 %v299, %v318
        %v342 = vsub.f32 %v300, %v319
        %v343 = vsub.f32 %v301, %v320
        %v344 = vsub.f32 %v302, %v321
        %v345 = vmul.f32 %v337, %v341
        %v346 = vmul.f32 %v338, %v342
        %v347 = vmul.f32 %v339, %v343
        %v348 = vmul.f32 %v340, %v344
        %v349 = vmul.f32 %v345, %v341
        %v350 = vmul.f32 %v346, %v342
        %v351 = vmul.f32 %v347, %v343
        %v352 = vmul.f32 %v348, %v344
        %vm357 = vcmask 1046528
        %v358 = vrot.slane %v349, 1
        %v359 = vrot.slane %v350, 1
        %v360 = vsel %vm357, %v358, %v359
        %v361 = vrot.slane %v351, 1
        %v362 = vsel %vm357, %v359, %v361
        %v363 = vrot.slane %v352, 1
        %v364 = vsel %vm357, %v361, %v363
        %v369 = vsel %vm230, %v360, 0.0
        %v370 = vsel %vm230, %v362, 0.0
        %v371 = vadd.f32 %v369, %v370
        %v372 = vsel %vm230, %v364, 0.0
        %v373 = vadd.f32 %v371, %v372
        %vm374 = vcmask 260096
        %v375 = vsel %vm374, %v363, 0.0
        %v376 = vadd.f32 %v373, %v375
        %377 = vadd.xlane.f32.xlu0 %v376
        %v378 = vpop.xlane.xlu0 %377
        %v379 = vrot.slane %v378, 4
        %v380 = vadd.f32 %v378, %v379
        %v381 = vrot.slane %v380, 2
        %v382 = vadd.f32 %v380, %v381
        %v383 = vrot.slane %v382, 1
        %v384 = vadd.f32 %v382, %v383
        %s385 = vtos %v384
        %v390 = vrot.slane %v337, 1
        %v391 = vrot.slane %v338, 1
        %v392 = vsel %vm357, %v390, %v391
        %v393 = vrot.slane %v339, 1
        %v394 = vsel %vm357, %v391, %v393
        %v395 = vrot.slane %v340, 1
        %v396 = vsel %vm357, %v393, %v395
        %v401 = vsel %vm230, %v392, 0.0
        %v402 = vsel %vm230, %v394, 0.0
        %v403 = vadd.f32 %v401, %v402
        %v404 = vsel %vm230, %v396, 0.0
        %v405 = vadd.f32 %v403, %v404
        %v406 = vsel %vm374, %v395, 0.0
        %v407 = vadd.f32 %v405, %v406
        %408 = vadd.xlane.f32.xlu0 %v407
        %v409 = vpop.xlane.xlu0 %408
        %v410 = vrot.slane %v409, 4
        %v411 = vadd.f32 %v409, %v410
        %v412 = vrot.slane %v411, 2
        %v413 = vadd.f32 %v411, %v412
        %v414 = vrot.slane %v413, 1
        %v415 = vadd.f32 %v413, %v414
        %s416 = vtos %v415
        %417 = vrot.lane.b32.xlu0 %v202, 1
        %v418 = vpop.permute.xlu0 %417
        %419 = vrot.lane.b32.xlu0 %v203, 1
        %v420 = vpop.permute.xlu0 %419
        %421 = vrot.lane.b32.xlu0 %v204, 1
        %v422 = vpop.permute.xlu0 %421
        %423 = vrot.lane.b32.xlu0 %v205, 1
        %v424 = vpop.permute.xlu0 %423
        %v429 = vsub.f32 %v202, %v418
        %v430 = vsub.f32 %v203, %v420
        %v431 = vsub.f32 %v204, %v422
        %v432 = vsub.f32 %v205, %v424
        %433 = vrot.lane.b32.xlu0 %v206, 1
        %v434 = vpop.permute.xlu0 %433
        %435 = vrot.lane.b32.xlu0 %v207, 1
        %v436 = vpop.permute.xlu0 %435
        %437 = vrot.lane.b32.xlu0 %v208, 1
        %v438 = vpop.permute.xlu0 %437
        %439 = vrot.lane.b32.xlu0 %v209, 1
        %v440 = vpop.permute.xlu0 %439
        %v445 = vsub.f32 %v206, %v434
        %v446 = vsub.f32 %v207, %v436
        %v447 = vsub.f32 %v208, %v438
        %v448 = vsub.f32 %v209, %v440
        %449 = vrot.lane.b32.xlu0 %v218, 1
        %v450 = vpop.permute.xlu0 %449
        %451 = vrot.lane.b32.xlu0 %v219, 1
        %v452 = vpop.permute.xlu0 %451
        %453 = vrot.lane.b32.xlu0 %v220, 1
        %v454 = vpop.permute.xlu0 %453
        %455 = vrot.lane.b32.xlu0 %v221, 1
        %v456 = vpop.permute.xlu0 %455
        %v461 = vmul.f32 %v218, %v450
        %v462 = vmul.f32 %v219, %v452
        %v463 = vmul.f32 %v220, %v454
        %v464 = vmul.f32 %v221, %v456
        %v465 = vsub.f32 %v429, %v445
        %v466 = vsub.f32 %v430, %v446
        %v467 = vsub.f32 %v431, %v447
        %v468 = vsub.f32 %v432, %v448
        %v469 = vmul.f32 %v461, %v465
        %v470 = vmul.f32 %v462, %v466
        %v471 = vmul.f32 %v463, %v467
        %v472 = vmul.f32 %v464, %v468
        %v473 = vmul.f32 %v469, %v465
        %v474 = vmul.f32 %v470, %v466
        %v475 = vmul.f32 %v471, %v467
        %v476 = vmul.f32 %v472, %v468
        %481 = vrot.lane.b32.xlu0 %v473, 127
        %v482 = vpop.permute.xlu0 %481
        %483 = vrot.lane.b32.xlu0 %v474, 127
        %v484 = vpop.permute.xlu0 %483
        %485 = vrot.lane.b32.xlu0 %v475, 127
        %v486 = vpop.permute.xlu0 %485
        %487 = vrot.lane.b32.xlu0 %v476, 127
        %v488 = vpop.permute.xlu0 %487
        %vm493 = vcmask 252928
        %v494 = vsel %vm493, %v482, 0.0
        %v495 = vsel %vm493, %v484, 0.0
        %v496 = vadd.f32 %v494, %v495
        %v497 = vsel %vm493, %v486, 0.0
        %v498 = vadd.f32 %v496, %v497
        %v499 = vsel %vm493, %v488, 0.0
        %v500 = vadd.f32 %v498, %v499
        %501 = vadd.xlane.f32.xlu0 %v500
        %v502 = vpop.xlane.xlu0 %501
        %v503 = vrot.slane %v502, 4
        %v504 = vadd.f32 %v502, %v503
        %v505 = vrot.slane %v504, 2
        %v506 = vadd.f32 %v504, %v505
        %v507 = vrot.slane %v506, 1
        %v508 = vadd.f32 %v506, %v507
        %s509 = vtos %v508
        %514 = vrot.lane.b32.xlu0 %v461, 127
        %v515 = vpop.permute.xlu0 %514
        %516 = vrot.lane.b32.xlu0 %v462, 127
        %v517 = vpop.permute.xlu0 %516
        %518 = vrot.lane.b32.xlu0 %v463, 127
        %v519 = vpop.permute.xlu0 %518
        %520 = vrot.lane.b32.xlu0 %v464, 127
        %v521 = vpop.permute.xlu0 %520
        %v526 = vsel %vm493, %v515, 0.0
        %v527 = vsel %vm493, %v517, 0.0
        %v528 = vadd.f32 %v526, %v527
        %v529 = vsel %vm493, %v519, 0.0
        %v530 = vadd.f32 %v528, %v529
        %v531 = vsel %vm493, %v521, 0.0
        %v532 = vadd.f32 %v530, %v531
        %533 = vadd.xlane.f32.xlu0 %v532
        %v534 = vpop.xlane.xlu0 %533
        %v535 = vrot.slane %v534, 4
        %v536 = vadd.f32 %v534, %v535
        %v537 = vrot.slane %v536, 2
        %v538 = vadd.f32 %v536, %v537
        %v539 = vrot.slane %v538, 1
        %v540 = vadd.f32 %v538, %v539
        %s541 = vtos %v540
        %v542 = vlaneseq
        %v543 = vand.u32 %v542, 127
        %v544 = vlaneseq
        %v545 = vshrl.u32 %v544, 7
        %vm546 = vcmp.eq.s32.totalorder %v545, 0
        %vm547 = vcmp.eq.s32.totalorder %v543, 0
        %vm548 = vmand %vm546, %vm547
        %v549 = vstv %s246
        %v550 = vsel %vm548, %v549, 0.0
        %vm551 = vcmp.eq.s32.totalorder %v543, 1
        %vm552 = vmand %vm546, %vm551
        %v553 = vstv %s262
        %v554 = vsel %vm552, %v553, %v550
        %vm555 = vcmp.eq.s32.totalorder %v543, 2
        %vm556 = vmand %vm546, %vm555
        %v557 = vstv %s282
        %v558 = vsel %vm556, %v557, %v554
        %vm559 = vcmp.eq.s32.totalorder %v543, 3
        %vm560 = vmand %vm546, %vm559
        %v561 = vstv %s385
        %v562 = vsel %vm560, %v561, %v558
        %vm563 = vcmp.eq.s32.totalorder %v543, 4
        %vm564 = vmand %vm546, %vm563
        %v565 = vstv %s416
        %v566 = vsel %vm564, %v565, %v562
        %vm567 = vcmp.eq.s32.totalorder %v543, 5
        %vm568 = vmand %vm546, %vm567
        %v569 = vstv %s509
        %v570 = vsel %vm568, %v569, %v566
        %vm571 = vcmp.eq.s32.totalorder %v543, 6
        %vm572 = vmand %vm546, %vm571
        %v573 = vstv %s541
        %v574 = vsel %vm572, %v573, %v570
        %575 = vst [vmem:[%s201] sm:$0xff] %v574
        %s576 = sand.u32 %s82, 1
        %s577 = scalar_lea.sflag [#allocation4], %s576
        %s578 = sand.u32 %s82, 1
        %s579 = smul.addr %s578, 8
        %s580 = scalar_lea.vmem [#allocation7], %s579
        // Predicated region
        $region37: #{tpu_custom_call.1} parent=27 // pred_check
          %p581 = pneg %p92
        $region38: #{tpu_custom_call.1} parent=27 // pred_check_branch
          %583 = sbr.rel (%p581) target = $region40
        $region39: #{tpu_custom_call.1} parent=27 // pred_region
          %s585 = ssub.s32 128, 128
          %586 = vsyncadd %s577, %s585
          %s587 = smul.addr %s22, 128
          %s588 = scalar_lea.hbm %s2, %s587
          %s590 = sshll.u32 %s580, 4
          %s591 = int_to_ptr.vmem [resolvable:$true] %s590
          %593 = dma.vmem_to_hbm [thread:$0]  %s591, 128, %s588, %s577
        $region40: #{tpu_custom_call.1} parent=27 // pred_fallthru
          _
      $region28: #{tpu_custom_call.1} parent=5 // pred_fallthru
        _
      %p594 = scmp.le.s32.totalorder 2, %s17
      // Predicated region
      $region41: #{tpu_custom_call.1} parent=5 // pred_check
        %p595 = pneg %p594
      $region42: #{tpu_custom_call.1} parent=5 // pred_check_branch
        %597 = sbr.rel (%p595) target = $region44
      $region43: #{tpu_custom_call.1} parent=5 // pred_region
        %s598 = ssub.s32 %s17, 2
        // Predicated region
        $region45: #{tpu_custom_call.1} parent=43 // pred_check
          %p599 = pneg %p98
        $region46: #{tpu_custom_call.1} parent=43 // pred_check_branch
          %601 = sbr.rel (%p599) target = $region48
        $region47: #{tpu_custom_call.1} parent=43 // pred_region
          %s602 = sand.u32 %s83, 1
          %s603 = scalar_lea.sflag [#allocation4], %s602
          %s604 = sand.u32 %s83, 1
          %s605 = smul.addr %s604, 8
          %s606 = scalar_lea.vmem [#allocation7], %s605
          %607 = dma.done %s603, 128
        $region48: #{tpu_custom_call.1} parent=43 // pred_fallthru
          _
      $region44: #{tpu_custom_call.1} parent=5 // pred_fallthru
        _
    $region6: #{tpu_custom_call.1} parent=1 // loop_footer
      %s21 = sadd.s32 1, %s17
    $region7: #{tpu_custom_call.1} parent=1 // loop_footer_branch
      %16 = sbr.rel target = $region3
    $region8: #{tpu_custom_call.1} parent=1 // loop_exit
      _
    %608 = vsyncpa [#allocation3], 1
    %s609 = scalar_lea.sflag [#allocation3], 1
    %610 = vsyncpa %s609, 1
    %611 = vsyncpa [#allocation6], 1
    %s612 = scalar_lea.sflag [#allocation6], 1
    %613 = vsyncpa %s612, 1
    %614 = vsyncpa [#allocation4], 1
    %s615 = scalar_lea.sflag [#allocation4], 1
    %616 = vsyncpa %s615, 1

</llo_original>
